<compile_context>
chip_gen: v7x
topology: tpu7x:2x2x1
jax: 0.10.0
libtpu: 0.0.40
codegen_flags: <defaults>
</compile_context>

<pallas_src>
import jax
import jax.numpy as jnp
from jax.experimental import pallas as pl
from jax.experimental.pallas import tpu as pltpu

_LANE = 128          # lane width (last vreg dim)
_BF16_SUBLANE = 16   # bf16 sublane packing multiple


def _round_up(n, m):
    return ((n + m - 1) // m) * m


def bpnn_kernel(x_ref, w1_ref, b1_ref, w2_ref, b2_ref, out_ref):
    # x arrives unpadded (TB, In) in f32; cast to bf16 for the MXU (f32 accumulation).
    x = x_ref[...].astype(w1_ref.dtype)
    h = jnp.dot(x, w1_ref[...], preferred_element_type=jnp.float32)
    h = jnp.maximum(h + b1_ref[...], 0.0)                       # bias + ReLU in f32 (VPU)
    o = jnp.dot(h.astype(w2_ref.dtype), w2_ref[...], preferred_element_type=jnp.float32)
    o = jnp.maximum(o + b2_ref[...], 0.0)
    out_ref[...] = o.astype(out_ref.dtype)                      # bf16 lane-dense writeback


def prepare_params(w1, b1, w2, b2):
    """One-time padding/casting of parameters (hoisted off the per-call hot path).

    w1: (In, H)  b1: (H,) or (1, H)  w2: (H, O)  b2: (O,) or (1, O)
    """
    In, H = w1.shape
    O = w2.shape[1]
    H_p = _round_up(H, _LANE)
    O_p = _round_up(O, _LANE)
    b1 = jnp.asarray(b1).reshape(1, -1)
    b2 = jnp.asarray(b2).reshape(1, -1)

    # Zero padding keeps the valid slice exact: padded hidden/output lanes stay 0
    # through bias-add + ReLU and are sliced off in the wrapper.
    w1_p = jnp.zeros((In, H_p), jnp.bfloat16).at[:, :H].set(w1.astype(jnp.bfloat16))
    w2_p = jnp.zeros((H_p, O_p), jnp.bfloat16).at[:H, :O].set(w2.astype(jnp.bfloat16))
    b1_p = jnp.zeros((1, H_p), jnp.float32).at[:, :H].set(b1.astype(jnp.float32))
    b2_p = jnp.zeros((1, O_p), jnp.float32).at[:, :O].set(b2.astype(jnp.float32))
    return {"w1": w1_p, "b1": b1_p, "w2": w2_p, "b2": b2_p, "out_size": O}


def _pick_batch_tile(B, block_b):
    """Batch tile: multiple of 16 (bf16 sublanes), >=2 grid steps when B allows it."""
    block_b = max(_BF16_SUBLANE, (block_b // _BF16_SUBLANE) * _BF16_SUBLANE)
    if B <= _BF16_SUBLANE:
        return B                                   # single full-dim block (always legal)
    half = _round_up(pl.cdiv(B, 2), _BF16_SUBLANE)  # ensures >=2 steps -> v7x 2nd TC gets work
    return min(block_b, half)


def bpnn_forward(x, params, *, block_b=1024):
    """x: (B, In) float32, params from prepare_params() -> (B, O) float32."""
    w1_p, b1_p, w2_p, b2_p = params["w1"], params["b1"], params["w2"], params["b2"]
    O = params["out_size"]
    B, In = x.shape
    assert In == w1_p.shape[0]
    H_p = w1_p.shape[1]
    O_p = w2_p.shape[1]

    TB = _pick_batch_tile(B, block_b)
    grid = (pl.cdiv(B, TB),)   # partial last tile handled by Pallas (OOB writes dropped)

    out_p = pl.pallas_call(
        bpnn_kernel,
        out_shape=jax.ShapeDtypeStruct((B, O_p), jnp.bfloat16),
        grid_spec=pltpu.PrefetchScalarGridSpec(
            num_scalar_prefetch=0,
            grid=grid,
            in_specs=[
                pl.BlockSpec((TB, In), lambda i: (i, 0)),     # activation stream, unpadded In
                pl.BlockSpec((In, H_p), lambda i: (0, 0)),    # weights resident across tiles
                pl.BlockSpec((1, H_p), lambda i: (0, 0)),
                pl.BlockSpec((H_p, O_p), lambda i: (0, 0)),
                pl.BlockSpec((1, O_p), lambda i: (0, 0)),
            ],
            out_specs=pl.BlockSpec((TB, O_p), lambda i: (i, 0)),
        ),
        compiler_params=pltpu.CompilerParams(
            dimension_semantics=("parallel",),   # shard batch tiles across TCs (v7x)
            vmem_limit_bytes=32 * 1024 * 1024,   # raises v5e's 16 MiB default; inert elsewhere
        ),
    )(x, w1_p, b1_p, w2_p, b2_p)

    # Lane slice + f32 cast (tiny, fusable into the consumer).
    return out_p[:, :O].astype(jnp.float32)


def init_params(key, input_size=2, hidden_size=5, output_size=1):
    # Deterministic init mimicking nn.Linear's U(-1/sqrt(fan_in), 1/sqrt(fan_in)).
    k1, k2, k3, k4 = jax.random.split(key, 4)
    lim1 = 1.0 / jnp.sqrt(jnp.float32(input_size))
    lim2 = 1.0 / jnp.sqrt(jnp.float32(hidden_size))
    w1 = jax.random.uniform(k1, (input_size, hidden_size), jnp.float32, -lim1, lim1)
    b1 = jax.random.uniform(k2, (1, hidden_size), jnp.float32, -lim1, lim1)
    w2 = jax.random.uniform(k3, (hidden_size, output_size), jnp.float32, -lim2, lim2)
    b2 = jax.random.uniform(k4, (1, output_size), jnp.float32, -lim2, lim2)
    return w1, b1, w2, b2


def _ref(x, w1, b1, w2, b2):
    return jnp.maximum(jnp.maximum(x @ w1 + b1, 0.0) @ w2 + b2, 0.0)


if __name__ == "__main__":
    key = jax.random.PRNGKey(0)
    kx, kx2, kp = jax.random.split(key, 3)

    batch, input_size, hidden_size, output_size = 8, 2, 5, 1
    w1, b1, w2, b2 = init_params(kp, input_size, hidden_size, output_size)
    params = prepare_params(w1, b1, w2, b2)   # one-time, off the hot path

    # Small batch (single tile).
    x = jax.random.normal(kx, (batch, input_size), jnp.float32)
    out = jax.block_until_ready(bpnn_forward(x, params))
    ref = _ref(x, w1, b1, w2, b2)
    assert out.shape == (batch, output_size)
    assert jnp.allclose(out, ref, atol=2e-2, rtol=2e-2), float(jnp.max(jnp.abs(out - ref)))

    # Larger, non-divisible batch (multi-tile grid, partial last tile).
    x2 = jax.random.normal(kx2, (300, input_size), jnp.float32)
    out2 = jax.block_until_ready(bpnn_forward(x2, params))
    ref2 = _ref(x2, w1, b1, w2, b2)
    assert out2.shape == (300, output_size)
    assert jnp.allclose(out2, ref2, atol=2e-2, rtol=2e-2), float(jnp.max(jnp.abs(out2 - ref2)))

    print("KERNEL_OK")
</pallas_src>

<mosaic_0001>
module attributes {stable_mosaic.version = 11 : i64} {
  func.func @bpnn_kernel(%arg0: i32, %arg1: memref<8x2xf32, #tpu.memory_space<vmem>>, %arg2: memref<2x128xbf16, #tpu.memory_space<vmem>>, %arg3: memref<1x128xf32, #tpu.memory_space<vmem>>, %arg4: memref<128x128xbf16, #tpu.memory_space<vmem>>, %arg5: memref<1x128xf32, #tpu.memory_space<vmem>>, %arg6: memref<8x128xbf16, #tpu.memory_space<vmem>>) attributes {dimension_semantics = [#tpu.dimension_semantics<parallel>], iteration_bounds = array<i64: 1>, scalar_prefetch = 0 : i64, scratch_operands = 0 : i64, tpu.core_type = #tpu.core_type<tc>, window_params = [{transform_indices = @transform_0, window_bounds = array<i64: 8, 2>}, {pipeline_mode = #tpu.pipeline_mode<synchronous>, transform_indices = @transform_1, window_bounds = array<i64: 2, 128>}, {pipeline_mode = #tpu.pipeline_mode<synchronous>, transform_indices = @transform_2, window_bounds = array<i64: 1, 128>}, {pipeline_mode = #tpu.pipeline_mode<synchronous>, transform_indices = @transform_3, window_bounds = array<i64: 128, 128>}, {pipeline_mode = #tpu.pipeline_mode<synchronous>, transform_indices = @transform_4, window_bounds = array<i64: 1, 128>}, {transform_indices = @transform_5, window_bounds = array<i64: 8, 128>}]} {
    %c0 = arith.constant 0 : index
    %c0_0 = arith.constant 0 : index
    %0 = vector.load %arg1[%c0, %c0_0] : memref<8x2xf32, #tpu.memory_space<vmem>>, vector<8x2xf32>
    %1 = arith.truncf %0 : vector<8x2xf32> to vector<8x2xbf16>
    %c0_1 = arith.constant 0 : index
    %c0_2 = arith.constant 0 : index
    %2 = vector.load %arg2[%c0_1, %c0_2] : memref<2x128xbf16, #tpu.memory_space<vmem>>, vector<2x128xbf16>
    %cst = arith.constant dense<0.000000e+00> : vector<8x128xf32>
    %3 = tpu.matmul %1, %2, %cst {dimension_numbers = #tpu.dot_dimension_numbers<[1], [0], [0], [1], [0, 0, 1, 1], [], []>} : vector<8x2xbf16>, vector<2x128xbf16>, vector<8x128xf32> -> vector<8x128xf32>
    %c0_3 = arith.constant 0 : index
    %c0_4 = arith.constant 0 : index
    %4 = vector.load %arg3[%c0_3, %c0_4] : memref<1x128xf32, #tpu.memory_space<vmem>>, vector<1x128xf32>
    %5 = vector.broadcast %4 : vector<1x128xf32> to vector<8x128xf32>
    %6 = arith.addf %3, %5 : vector<8x128xf32>
    %cst_5 = arith.constant 0.000000e+00 : f32
    %7 = vector.broadcast %cst_5 : f32 to vector<8x128xf32>
    %8 = arith.maximumf %6, %7 : vector<8x128xf32>
    %9 = arith.truncf %8 : vector<8x128xf32> to vector<8x128xbf16>
    %c0_6 = arith.constant 0 : index
    %c0_7 = arith.constant 0 : index
    %10 = vector.load %arg4[%c0_6, %c0_7] : memref<128x128xbf16, #tpu.memory_space<vmem>>, vector<128x128xbf16>
    %cst_8 = arith.constant dense<0.000000e+00> : vector<8x128xf32>
    %11 = tpu.matmul %9, %10, %cst_8 {dimension_numbers = #tpu.dot_dimension_numbers<[1], [0], [0], [1], [0, 0, 1, 1], [], []>} : vector<8x128xbf16>, vector<128x128xbf16>, vector<8x128xf32> -> vector<8x128xf32>
    %c0_9 = arith.constant 0 : index
    %c0_10 = arith.constant 0 : index
    %12 = vector.load %arg5[%c0_9, %c0_10] : memref<1x128xf32, #tpu.memory_space<vmem>>, vector<1x128xf32>
    %13 = vector.broadcast %12 : vector<1x128xf32> to vector<8x128xf32>
    %14 = arith.addf %11, %13 : vector<8x128xf32>
    %cst_11 = arith.constant 0.000000e+00 : f32
    %15 = vector.broadcast %cst_11 : f32 to vector<8x128xf32>
    %16 = arith.maximumf %14, %15 : vector<8x128xf32>
    %17 = arith.truncf %16 : vector<8x128xf32> to vector<8x128xbf16>
    %c0_12 = arith.constant 0 : index
    %c0_13 = arith.constant 0 : index
    %18 = vector.load %arg6[%c0_12, %c0_13] : memref<8x128xbf16, #tpu.memory_space<vmem>>, vector<8x128xbf16>
    tpu.vector_store %arg6[%c0_12, %c0_13], %17 {strides = array<i32>} : memref<8x128xbf16, #tpu.memory_space<vmem>>, vector<8x128xbf16>,
    return
  }
  func.func @transform_0(%arg0: i32) -> (i32, i32) {
    %c0_i32 = arith.constant 0 : i32
    %c0_i32_0 = arith.constant 0 : i32
    return %arg0, %c0_i32 : i32, i32
  }
  func.func @transform_1(%arg0: i32) -> (i32, i32) {
    %c0_i32 = arith.constant 0 : i32
    %c0_i32_0 = arith.constant 0 : i32
    %c0_i32_1 = arith.constant 0 : i32
    return %c0_i32, %c0_i32_0 : i32, i32
  }
  func.func @transform_2(%arg0: i32) -> (i32, i32) {
    %c0_i32 = arith.constant 0 : i32
    %c0_i32_0 = arith.constant 0 : i32
    %c0_i32_1 = arith.constant 0 : i32
    return %c0_i32, %c0_i32_0 : i32, i32
  }
  func.func @transform_3(%arg0: i32) -> (i32, i32) {
    %c0_i32 = arith.constant 0 : i32
    %c0_i32_0 = arith.constant 0 : i32
    %c0_i32_1 = arith.constant 0 : i32
    return %c0_i32, %c0_i32_0 : i32, i32
  }
  func.func @transform_4(%arg0: i32) -> (i32, i32) {
    %c0_i32 = arith.constant 0 : i32
    %c0_i32_0 = arith.constant 0 : i32
    %c0_i32_1 = arith.constant 0 : i32
    return %c0_i32, %c0_i32_0 : i32, i32
  }
  func.func @transform_5(%arg0: i32) -> (i32, i32) {
    %c0_i32 = arith.constant 0 : i32
    %c0_i32_0 = arith.constant 0 : i32
    return %arg0, %c0_i32 : i32, i32
  }
}

</mosaic_0001>

<llo_original>
// kernel: tpu_custom_call.1
$region0: #{tpu_custom_call.1}
  #allocation0 [shape = 'u32[]', space=smem, size = 0x4, offset = 0x4, fixed_abs, tag = 'smem constant byte address 0x4 - core index']
  #allocation1 [shape = 'u32[144,128]{1,0:T(1,128)}', space=vmem, size = 0x12000, scoped, tag = 'internal scratch']
  %s0 = inlined_call_operand.vmem [shape: f32[8,2], index: 0, kind: input, shape index: {}]
  %s1 = inlined_call_operand.vmem [shape: bf16[2,128], index: 1, kind: input, shape index: {}]
  %s2 = inlined_call_operand.vmem [shape: f32[1,128], index: 2, kind: input, shape index: {}]
  %s3 = inlined_call_operand.hbm [shape: bf16[128,128], index: 3, kind: input, shape index: {}]
  %s4 = inlined_call_operand.vmem [shape: f32[1,128], index: 4, kind: input, shape index: {}]
  %s5 = inlined_call_operand.hbm [shape: bf16[8,128], index: 5, kind: output, shape index: {}]
  %s6 = sld [smem:[#allocation0]]
  $region34: #{tpu_custom_call.1} parent=0
    _
  %s8 = ssub.s32 1, %s6
  %s9 = scalar_select 0, %s8, %s6
  $region1: #{tpu_custom_call.1} parent=0
    #allocation2 [shape = 'u8[32768]{0}', space=vmem, size = 0x8000, scoped, tag = 'input window, operand 3, single buffered']
    #allocation3 [shape = 's32[1]{0}', space=sflag, size = 0x4, scoped, tag = 'scoped memory for tpu_custom_call.1']
    #allocation4 [shape = 's32[1]{0}', space=sflag, size = 0x4, scoped, tag = 'scoped memory for tpu_custom_call.1']
    #allocation5 [shape = 'u8[2048]{0}', space=vmem, size = 0x800, scoped, tag = 'output window, operand 0, single buffered']
    %10 = vsyncpa [#allocation3], 0
    %11 = vsyncpa [#allocation4], 0
    // Predicated region
    $region2: #{tpu_custom_call.1} parent=1 // pred_check
      _
    $region3: #{tpu_custom_call.1} parent=1 // pred_check_branch
      %13 = sbr.rel (0) target = $region5
    $region4: #{tpu_custom_call.1} parent=1 // pred_region
      _
    $region5: #{tpu_custom_call.1} parent=1 // pred_fallthru
      _
    // Predicated region
    $region6: #{tpu_custom_call.1} parent=1 // pred_check
      _
    $region7: #{tpu_custom_call.1} parent=1 // pred_check_branch
      %15 = sbr.rel (0) target = $region9
    $region8: #{tpu_custom_call.1} parent=1 // pred_region
      _
    $region9: #{tpu_custom_call.1} parent=1 // pred_fallthru
      _
    // Predicated region
    $region10: #{tpu_custom_call.1} parent=1 // pred_check
      _
    $region11: #{tpu_custom_call.1} parent=1 // pred_check_branch
      %17 = sbr.rel (0) target = $region13
    $region12: #{tpu_custom_call.1} parent=1 // pred_region
      _
    $region13: #{tpu_custom_call.1} parent=1 // pred_fallthru
      _
    // Predicated region
    $region14: #{tpu_custom_call.1} parent=1 // pred_check
      _
    $region15: #{tpu_custom_call.1} parent=1 // pred_check_branch
      %19 = sbr.rel (0) target = $region17
    $region16: #{tpu_custom_call.1} parent=1 // pred_region
      %s21 = ssub.s32 1024, 1024
      %22 = vsyncadd [#allocation3], %s21
      %s23 = sshll.u32 [#allocation2], 4
      %s24 = int_to_ptr.vmem [resolvable:$true] %s23
      %29 = dma.hbm_to_vmem [thread:$0]  %s3, 1024, %s24, [#allocation3], 64, 64, 4
    $region17: #{tpu_custom_call.1} parent=1 // pred_fallthru
      _
    // Predicated region
    $region18: #{tpu_custom_call.1} parent=1 // pred_check
      _
    $region19: #{tpu_custom_call.1} parent=1 // pred_check_branch
      %31 = sbr.rel (0) target = $region21
    $region20: #{tpu_custom_call.1} parent=1 // pred_region
      _
    $region21: #{tpu_custom_call.1} parent=1 // pred_fallthru
      _
    // Predicated region
    $region22: #{tpu_custom_call.1} parent=1 // pred_check
      _
    $region23: #{tpu_custom_call.1} parent=1 // pred_check_branch
      %33 = sbr.rel (0) target = $region25
    $region24: #{tpu_custom_call.1} parent=1 // pred_region
      %34 = dma.done [#allocation3], 1024
    $region25: #{tpu_custom_call.1} parent=1 // pred_fallthru
      _
    %v36 = vld [vmem:[%s0] sm:$0xff]
    %v37 = vpack.c.bf16 %v36, %v36
    %v38 = vld [vmem:[%s1] sm:$0x1]
    %v39 = vld [vmem:[%s2] sm:$0x1]
    %v41 = vlaneseq
    %v42 = vshrl.u32 %v41, 7
    %v43 = vsub.s32 0, %v42
    %v44 = vrot.slane %v39, %v43
    %vm46 = vcmask 15360
    %v48 = vsel %vm46, %v37, 0
    %vm50 = vcmask 1040384
    %v52 = vsel %vm50, %v38, 0
    %54 = vmatprep.subr.bf16.mxu0 0
    %55 = vmatpush1.bf16.msra.mxu0 %v52
    %56 = vmatprep.subr.bf16.mxu0 0
    %57 = vmatpush1.bf16.msra.mxu0 0
    %58 = vmatprep.subr.bf16.mxu0 0
    %59 = vmatpush1.bf16.msra.mxu0 0
    %60 = vmatprep.subr.bf16.mxu0 0
    %61 = vmatpush1.bf16.msra.mxu0 0
    %62 = vmatprep.subr.bf16.mxu0 0
    %63 = vmatpush1.bf16.msra.mxu0 0
    %64 = vmatprep.subr.bf16.mxu0 0
    %65 = vmatpush1.bf16.msra.mxu0 0
    %66 = vmatprep.subr.bf16.mxu0 0
    %67 = vmatpush1.bf16.msra.mxu0 0
    %68 = vmatprep.subr.bf16.mxu0 0
    %69 = vmatpush1.bf16.msra.mxu0 0
    %70 = vmatprep.subr.bf16.mxu0 0
    %71 = vmatpush1.bf16.msra.mxu0 0
    %72 = vmatprep.subr.bf16.mxu0 0
    %73 = vmatpush1.bf16.msra.mxu0 0
    %74 = vmatprep.subr.bf16.mxu0 0
    %75 = vmatpush1.bf16.msra.mxu0 0
    %76 = vmatprep.subr.bf16.mxu0 0
    %77 = vmatpush1.bf16.msra.mxu0 0
    %78 = vmatprep.subr.bf16.mxu0 0
    %79 = vmatpush1.bf16.msra.mxu0 0
    %80 = vmatprep.subr.bf16.mxu0 0
    %81 = vmatpush1.bf16.msra.mxu0 0
    %82 = vmatprep.subr.bf16.mxu0 0
    %83 = vmatpush1.bf16.msra.mxu0 0
    %84 = vmatprep.subr.bf16.mxu0 0
    %85 = vmatpush1.bf16.msra.mxu0 0
    %86 = vmatprep.mubr.bf16.mxu0 0
    %87 = vmatmul.mubr.bf16.gmra.mrb[0].mxu0 %v48
    %v88 = vpop.f32.mrb[0].mxu0
    %v89 = vadd.f32 %v44, %v88
    %v90 = vpop.f32.mrb[0].mxu0
    %v91 = vpop.f32.mrb[0].mxu0
    %v92 = vpop.f32.mrb[0].mxu0
    %93 = vdwg.mxu0
    %v94 = vmax.f32 %v89, 0.0
    %v95 = vpack.c.bf16 %v94, %v94
    %v96 = vld [vmem:[#allocation2] sm:$0xf]
    %v97 = vld [vmem:[#allocation2 + $0x4] sm:$0xf]
    %v98 = vld [vmem:[#allocation2 + $0x8] sm:$0xf]
    %v99 = vld [vmem:[#allocation2 + $0xc] sm:$0xf]
    %v100 = vld [vmem:[#allocation2 + $0x10] sm:$0xf]
    %v101 = vld [vmem:[#allocation2 + $0x14] sm:$0xf]
    %v102 = vld [vmem:[#allocation2 + $0x18] sm:$0xf]
    %v103 = vld [vmem:[#allocation2 + $0x1c] sm:$0xf]
    %v104 = vld [vmem:[#allocation2 + $0x20] sm:$0xf]
    %v105 = vld [vmem:[#allocation2 + $0x24] sm:$0xf]
    %v106 = vld [vmem:[#allocation2 + $0x28] sm:$0xf]
    %v107 = vld [vmem:[#allocation2 + $0x2c] sm:$0xf]
    %v108 = vld [vmem:[#allocation2 + $0x30] sm:$0xf]
    %v109 = vld [vmem:[#allocation2 + $0x34] sm:$0xf]
    %v110 = vld [vmem:[#allocation2 + $0x38] sm:$0xf]
    %v111 = vld [vmem:[#allocation2 + $0x3c] sm:$0xf]
    %v112 = vld [vmem:[%s4] sm:$0x1]
    %v114 = vlaneseq
    %v115 = vshrl.u32 %v114, 7
    %v116 = vsub.s32 0, %v115
    %v117 = vrot.slane %v112, %v116
    %v135 = vunpack.c.l.b16 %v96
    %v136 = vunpack.c.l.b16 %v97
    %v137 = vunpack.c.l.b16 %v98
    %v138 = vunpack.c.l.b16 %v99
    %v139 = vunpack.c.l.b16 %v100
    %v140 = vunpack.c.l.b16 %v101
    %v141 = vunpack.c.l.b16 %v102
    %v142 = vunpack.c.l.b16 %v103
    %v143 = vunpack.c.l.b16 %v104
    %v144 = vunpack.c.l.b16 %v105
    %v145 = vunpack.c.l.b16 %v106
    %v146 = vunpack.c.l.b16 %v107
    %v147 = vunpack.c.l.b16 %v108
    %v148 = vunpack.c.l.b16 %v109
    %v149 = vunpack.c.l.b16 %v110
    %v150 = vunpack.c.l.b16 %v111
    %v151 = vpack.c.b16 %v136, %v135
    %v152 = vpack.c.b16 %v138, %v137
    %v153 = vpack.c.b16 %v140, %v139
    %v154 = vpack.c.b16 %v142, %v141
    %v155 = vpack.c.b16 %v144, %v143
    %v156 = vpack.c.b16 %v146, %v145
    %v157 = vpack.c.b16 %v148, %v147
    %v158 = vpack.c.b16 %v150, %v149
    %167 = vmatprep.subr.bf16.mxu0 0
    %168 = vmatpush1.bf16.msra.mxu0 %v151
    %169 = vmatprep.subr.bf16.mxu0 0
    %170 = vmatpush1.bf16.msra.mxu0 %v152
    %171 = vmatprep.subr.bf16.mxu0 0
    %172 = vmatpush1.bf16.msra.mxu0 %v153
    %173 = vmatprep.subr.bf16.mxu0 0
    %174 = vmatpush1.bf16.msra.mxu0 %v154
    %175 = vmatprep.subr.bf16.mxu0 0
    %176 = vmatpush1.bf16.msra.mxu0 %v155
    %177 = vmatprep.subr.bf16.mxu0 0
    %178 = vmatpush1.bf16.msra.mxu0 %v156
    %179 = vmatprep.subr.bf16.mxu0 0
    %180 = vmatpush1.bf16.msra.mxu0 %v157
    %181 = vmatprep.subr.bf16.mxu0 0
    %182 = vmatpush1.bf16.msra.mxu0 %v158
    %183 = vmatprep.subr.bf16.mxu0 0
    %184 = vmatpush1.bf16.msra.mxu0 0
    %185 = vmatprep.subr.bf16.mxu0 0
    %186 = vmatpush1.bf16.msra.mxu0 0
    %187 = vmatprep.subr.bf16.mxu0 0
    %188 = vmatpush1.bf16.msra.mxu0 0
    %189 = vmatprep.subr.bf16.mxu0 0
    %190 = vmatpush1.bf16.msra.mxu0 0
    %191 = vmatprep.subr.bf16.mxu0 0
    %192 = vmatpush1.bf16.msra.mxu0 0
    %193 = vmatprep.subr.bf16.mxu0 0
    %194 = vmatpush1.bf16.msra.mxu0 0
    %195 = vmatprep.subr.bf16.mxu0 0
    %196 = vmatpush1.bf16.msra.mxu0 0
    %197 = vmatprep.subr.bf16.mxu0 0
    %198 = vmatpush1.bf16.msra.mxu0 0
    %199 = vmatprep.mubr.bf16.mxu0 0
    %200 = vmatmul.mubr.bf16.gmra.mrb[0].mxu0 %v95
    %v201 = vpop.f32.mrb[0].mxu0
    %v202 = vadd.f32 %v117, %v201
    %v203 = vpop.f32.mrb[0].mxu0
    %v204 = vpop.f32.mrb[0].mxu0
    %v205 = vpop.f32.mrb[0].mxu0
    %206 = vdwg.mxu0
    %v207 = vmax.f32 %v202, 0.0
    %v208 = vpack.c.bf16 %v207, %v207
    %209 = vst [vmem:[#allocation5] sm:$0xf] %v208
    // Predicated region
    $region26: #{tpu_custom_call.1} parent=1 // pred_check
      _
    $region27: #{tpu_custom_call.1} parent=1 // pred_check_branch
      %211 = sbr.rel (0) target = $region29
    $region28: #{tpu_custom_call.1} parent=1 // pred_region
      %s213 = ssub.s32 64, 64
      %214 = vsyncadd [#allocation4], %s213
      %s216 = sshll.u32 [#allocation5], 4
      %s217 = int_to_ptr.vmem [resolvable:$true] %s216
      %219 = dma.vmem_to_hbm [thread:$0]  %s217, 64, %s5, [#allocation4]
    $region29: #{tpu_custom_call.1} parent=1 // pred_fallthru
      _
    // Predicated region
    $region30: #{tpu_custom_call.1} parent=1 // pred_check
      _
    $region31: #{tpu_custom_call.1} parent=1 // pred_check_branch
      %221 = sbr.rel (0) target = $region33
    $region32: #{tpu_custom_call.1} parent=1 // pred_region
      %222 = dma.done [#allocation4], 64
    $region33: #{tpu_custom_call.1} parent=1 // pred_fallthru
      _
    %223 = vsyncpa [#allocation3], 1
    %224 = vsyncpa [#allocation4], 1

</llo_original>
